<compile_context>
chip_gen: v6e
topology: v6e:2x2x1
jax: 0.10.0
libtpu: 0.0.40
codegen_flags: <defaults>
</compile_context>

<pallas_src>
import functools

import jax
import jax.numpy as jnp
from jax.experimental import pallas as pl
from jax.experimental.pallas import tpu as pltpu


LANE = 128      # vreg lane width
SUBLANE = 8     # f32 sublane width


def _round_up(x, m):
    return ((x + m - 1) // m) * m


def _cdiv(a, b):
    return (a + b - 1) // b


# -----------------------------------------------------------------------------
# One-time (cached) hardware / capability queries — NOT in the per-call path.
# -----------------------------------------------------------------------------
@functools.lru_cache(maxsize=None)
def _vmem_capacity_bytes():
    try:
        return int(pltpu.get_tpu_info().vmem_capacity_bytes)
    except Exception:
        return 64 * 1024 * 1024          # conservative default (v7x: 64 MiB/TC)


@functools.lru_cache(maxsize=None)
def _is_megacore():
    # v7x has 2 TensorCores/chip; they split grid axes marked "parallel".
    try:
        return "v7" in jax.devices()[0].device_kind.lower()
    except Exception:
        return False


@functools.lru_cache(maxsize=None)
def _supports_single_buffering():
    # Static capability check (constructor probe only — no kernel compile/run).
    if not hasattr(pl, "Buffered"):
        return False
    try:
        pl.BlockSpec((SUBLANE, LANE), lambda i: (0, 0),
                     pipeline_mode=pl.Buffered(1))
        return True
    except Exception:
        return False


# -----------------------------------------------------------------------------
# Kernel
# -----------------------------------------------------------------------------
def _make_qnet_kernel(num_layers, dims_p, compute_dtype):
    """Fused MLP forward: relu(...relu(x@W1+b1)...)@Wn+bn, f32 accumulation."""

    def kernel(x_ref, *refs):
        w_refs = refs[:num_layers]
        b_ref = refs[num_layers]
        o_ref = refs[num_layers + 1]

        b_all = b_ref[...]                       # (num_layers, max_dp) f32
        h = x_ref[...]                           # (batch_tile, state_dim) f32
        for li in range(num_layers):
            # f32 or bf16 operands; always f32 accumulation on the MXU.
            h = jnp.dot(h.astype(compute_dtype), w_refs[li][...],
                        preferred_element_type=jnp.float32)
            d_out = dims_p[li + 1]
            h = h + b_all[li:li + 1, :d_out]     # f32 bias add (row broadcast)
            if li != num_layers - 1:
                h = jnp.maximum(h, 0.0)          # f32 ReLU
        o_ref[...] = h.astype(o_ref.dtype)

    return kernel


@functools.partial(
    jax.jit,
    static_argnames=("dims", "batch_tile", "single_buffer", "vmem_limit"))
def _qnet_forward_impl(x, weights, biases, *, dims, batch_tile, single_buffer,
                       vmem_limit):
    num_layers = len(dims) - 1
    B, state_dim = x.shape
    action_dim = dims[-1]
    dims_p = (dims[0],) + tuple(_round_up(d, LANE) for d in dims[1:])
    compute_dtype = weights[0].dtype

    b_pad = _round_up(B, batch_tile)
    if b_pad != B:
        x = jnp.pad(x, ((0, b_pad - B), (0, 0)))
    grid = (b_pad // batch_tile,)

    res_kwargs = {"pipeline_mode": pl.Buffered(1)} if single_buffer else {}

    def resident(shape):
        # Same block index every grid step -> stays resident in VMEM.
        return pl.BlockSpec(shape, lambda i: (0, 0), **res_kwargs)

    in_specs = [pl.BlockSpec((batch_tile, state_dim), lambda i: (i, 0))]
    for li in range(num_layers):
        in_specs.append(resident(weights[li].shape))
    in_specs.append(resident(biases.shape))

    out_p = pl.pallas_call(
        _make_qnet_kernel(num_layers, dims_p, compute_dtype),
        out_shape=jax.ShapeDtypeStruct((b_pad, dims_p[-1]), jnp.float32),
        grid_spec=pltpu.PrefetchScalarGridSpec(
            num_scalar_prefetch=0,
            grid=grid,
            in_specs=in_specs,
            out_specs=pl.BlockSpec((batch_tile, dims_p[-1]), lambda i: (i, 0)),
        ),
        compiler_params=pltpu.CompilerParams(
            dimension_semantics=("parallel",),
            vmem_limit_bytes=int(vmem_limit),
        ),
    )(x, *weights, biases)

    return out_p[:B, :action_dim]


# -----------------------------------------------------------------------------
# Wrappers
# -----------------------------------------------------------------------------
def prepare_params(params, compute_dtype=jnp.float32):
    """Pad & cast QNetwork parameters ONCE (hoisted out of the forward path).

    params : dict with w{i} [in, out] (pre-transposed nn.Linear weight) and
             b{i} [out] or [1, out], for i = 1..num_layers.
    compute_dtype : matmul operand dtype.  float32 (default) matches the torch
        fp32 module; bfloat16 halves weight DMA/VMEM bytes (f32 accumulation
        and f32 bias/ReLU are kept either way) at a small quantization cost.
    """
    num_layers = len(params) // 2
    dims = [int(params["w1"].shape[0])]
    for i in range(1, num_layers + 1):
        dims.append(int(params[f"w{i}"].shape[1]))
    dims = tuple(dims)
    dims_p = (dims[0],) + tuple(_round_up(d, LANE) for d in dims[1:])

    weights = []
    for i in range(1, num_layers + 1):
        w = jnp.asarray(params[f"w{i}"])
        k_in = dims[0] if i == 1 else dims_p[i - 1]   # x's K dim is NOT padded
        w_p = jnp.zeros((k_in, dims_p[i]), compute_dtype)
        w_p = w_p.at[:w.shape[0], :w.shape[1]].set(w.astype(compute_dtype))
        weights.append(w_p)

    max_dp = max(dims_p[1:])
    biases = jnp.zeros((num_layers, max_dp), jnp.float32)
    for i in range(1, num_layers + 1):
        b = jnp.asarray(params[f"b{i}"], jnp.float32).reshape(-1)
        biases = biases.at[i - 1, :b.shape[0]].set(b)

    return {"weights": tuple(weights), "biases": biases,
            "dims": dims, "dims_p": dims_p}


def _choose_batch_tile(B, dims, dims_p, itemsize, single_buffer):
    """VMEM-budget-driven batch tile (generation-aware grid-step count)."""
    num_layers = len(dims) - 1
    max_dp = max(dims_p[1:])
    w_bufs = 1 if single_buffer else 2
    w_bytes = sum(dims_p[i] * dims_p[i + 1] for i in range(num_layers)) * itemsize
    resident_bytes = w_bufs * w_bytes + 2 * num_layers * max_dp * 4

    budget = max(_vmem_capacity_bytes() // 2 - resident_bytes, 2 * 1024 * 1024)
    # Per-row VMEM: double-buffered x / out streams + f32 activation temps.
    per_row = 2 * dims[0] * 4 + 2 * dims_p[-1] * 4 + 4 * max_dp * 4
    cap = max(SUBLANE, min(2048, (budget // per_row) // SUBLANE * SUBLANE))

    b8 = _round_up(max(B, 1), SUBLANE)
    if b8 <= cap:
        return b8                        # single grid step: no per-step overhead
    steps = _cdiv(b8, cap)
    if _is_megacore() and steps % 2:
        steps += 1                       # even split across v7x's 2 TensorCores
    return _round_up(_cdiv(B, steps), SUBLANE)


def qnetwork_forward(x, prepared, *, batch_tile=None):
    """Fused QNetwork forward pass.  Returns [B, action_dim] float32 Q-values."""
    x = jnp.asarray(x, jnp.float32)
    dims, dims_p = prepared["dims"], prepared["dims_p"]
    weights, biases = prepared["weights"], prepared["biases"]
    itemsize = jnp.dtype(weights[0].dtype).itemsize

    w_bytes = sum(int(w.size) for w in weights) * itemsize
    # Only request single-buffered weights when double-buffering them would
    # actually pressure VMEM (keeps the tiny-net path on default specs).
    single_buffer = (_supports_single_buffering()
                     and 2 * w_bytes > _vmem_capacity_bytes() // 8)

    if batch_tile is None:
        batch_tile = _choose_batch_tile(x.shape[0], dims, dims_p, itemsize,
                                        single_buffer)
    batch_tile = _round_up(int(batch_tile), SUBLANE)

    max_dp = max(dims_p[1:])
    w_bufs = 1 if single_buffer else 2
    vmem_bytes = (w_bufs * w_bytes + 2 * int(biases.size) * 4
                  + 2 * batch_tile * dims[0] * 4         # x stream (dbl-buf)
                  + 2 * batch_tile * dims_p[-1] * 4      # out stream (dbl-buf)
                  + 4 * batch_tile * max_dp * 4)         # activation temps
    vmem_limit = max(2 * vmem_bytes, 16 * 1024 * 1024)
    vmem_limit = min(vmem_limit, _vmem_capacity_bytes() - 8 * 1024 * 1024)

    return _qnet_forward_impl(x, weights, biases,
                              dims=dims, batch_tile=batch_tile,
                              single_buffer=bool(single_buffer),
                              vmem_limit=int(vmem_limit))


# -----------------------------------------------------------------------------
# Init + pure-JAX reference (mirrors the PyTorch module)
# -----------------------------------------------------------------------------
def xavier_uniform(key, fan_in, fan_out, dtype=jnp.float32):
    """Matches torch.nn.init.xavier_uniform_ (gain=1), in [in, out] layout."""
    limit = jnp.sqrt(6.0 / (fan_in + fan_out))
    return jax.random.uniform(key, (fan_in, fan_out), dtype, -limit, limit)


def init_qnetwork_params(key, state_dim, action_dim, hidden_layers):
    dims = [state_dim] + list(hidden_layers) + [action_dim]
    params = {}
    keys = jax.random.split(key, len(dims) - 1)
    for i, (d_in, d_out) in enumerate(zip(dims[:-1], dims[1:]), start=1):
        params[f"w{i}"] = xavier_uniform(keys[i - 1], d_in, d_out)
        params[f"b{i}"] = jnp.full((1, d_out), 0.01, jnp.float32)
    return params


def qnetwork_ref(x, params, compute_dtype=jnp.float32):
    """Pure-JAX reference; compute_dtype controls the dot-operand precision."""
    num_layers = len(params) // 2
    h = jnp.asarray(x, jnp.float32)
    for i in range(1, num_layers + 1):
        w = params[f"w{i}"].astype(compute_dtype)
        h = jnp.dot(h.astype(compute_dtype), w,
                    preferred_element_type=jnp.float32)
        h = h + params[f"b{i}"].reshape(1, -1).astype(jnp.float32)
        if i != num_layers:
            h = jnp.maximum(h, 0.0)
    return h


if __name__ == "__main__":
    # QNetwork(state_dim=16, action_dim=4, hidden_layers=[32, 32]), batch of 8.
    state_dim, action_dim, hidden_layers = 16, 4, (32, 32)
    batch = 8

    key = jax.random.PRNGKey(0)
    k_params, k_x = jax.random.split(key)
    params = init_qnetwork_params(k_params, state_dim, action_dim, hidden_layers)
    x = jax.random.normal(k_x, (batch, state_dim), jnp.float32)

    # Default path: float32 operands -> parity with the torch fp32 module.
    prepared = prepare_params(params)                 # one-time padding/casting
    q = jax.block_until_ready(qnetwork_forward(x, prepared))
    assert q.shape == (batch, action_dim)
    q_ref = qnetwork_ref(x, params, compute_dtype=jnp.float32)
    assert jnp.allclose(q, q_ref, atol=5e-3, rtol=5e-3), "mismatch vs f32 reference"

    # Opt-in bf16 weights/activations (f32 accumulation) for lower DMA/VMEM.
    prepared_bf16 = prepare_params(params, compute_dtype=jnp.bfloat16)
    q_bf16 = jax.block_until_ready(qnetwork_forward(x, prepared_bf16))
    q_ref_bf16 = qnetwork_ref(x, params, compute_dtype=jnp.bfloat16)
    assert jnp.allclose(q_bf16, q_ref_bf16, atol=2e-2, rtol=2e-2), \
        "mismatch vs bf16 reference"

    print("KERNEL_OK")
</pallas_src>

<mosaic_0001>
module attributes {stable_mosaic.version = 11 : i64} {
  func.func @kernel(%arg0: i32, %arg1: memref<8x16xf32, #tpu.memory_space<vmem>>, %arg2: memref<16x128xf32, #tpu.memory_space<vmem>>, %arg3: memref<128x128xf32, #tpu.memory_space<vmem>>, %arg4: memref<128x128xf32, #tpu.memory_space<vmem>>, %arg5: memref<3x128xf32, #tpu.memory_space<vmem>>, %arg6: memref<8x128xf32, #tpu.memory_space<vmem>>) attributes {dimension_semantics = [#tpu.dimension_semantics<parallel>], iteration_bounds = array<i64: 1>, scalar_prefetch = 0 : i64, scratch_operands = 0 : i64, tpu.core_type = #tpu.core_type<tc>, window_params = [{transform_indices = @transform_0, window_bounds = array<i64: 8, 16>}, {pipeline_mode = #tpu.pipeline_mode<synchronous>, transform_indices = @transform_1, window_bounds = array<i64: 16, 128>}, {pipeline_mode = #tpu.pipeline_mode<synchronous>, transform_indices = @transform_2, window_bounds = array<i64: 128, 128>}, {pipeline_mode = #tpu.pipeline_mode<synchronous>, transform_indices = @transform_3, window_bounds = array<i64: 128, 128>}, {pipeline_mode = #tpu.pipeline_mode<synchronous>, transform_indices = @transform_4, window_bounds = array<i64: 3, 128>}, {transform_indices = @transform_5, window_bounds = array<i64: 8, 128>}]} {
    %c0 = arith.constant 0 : index
    %c0_0 = arith.constant 0 : index
    %0 = vector.load %arg5[%c0, %c0_0] : memref<3x128xf32, #tpu.memory_space<vmem>>, vector<3x128xf32>
    %c0_1 = arith.constant 0 : index
    %c0_2 = arith.constant 0 : index
    %1 = vector.load %arg1[%c0_1, %c0_2] : memref<8x16xf32, #tpu.memory_space<vmem>>, vector<8x16xf32>
    %c0_3 = arith.constant 0 : index
    %c0_4 = arith.constant 0 : index
    %2 = vector.load %arg2[%c0_3, %c0_4] : memref<16x128xf32, #tpu.memory_space<vmem>>, vector<16x128xf32>
    %cst = arith.constant dense<0.000000e+00> : vector<8x128xf32>
    %3 = tpu.matmul %1, %2, %cst {dimension_numbers = #tpu.dot_dimension_numbers<[1], [0], [0], [1], [0, 0, 1, 1], [], []>} : vector<8x16xf32>, vector<16x128xf32>, vector<8x128xf32> -> vector<8x128xf32>
    %4 = vector.extract_strided_slice %0 {offsets = [0, 0], sizes = [1, 128], strides = [1, 1]} : vector<3x128xf32> to vector<1x128xf32>
    %5 = vector.broadcast %4 : vector<1x128xf32> to vector<8x128xf32>
    %6 = arith.addf %3, %5 : vector<8x128xf32>
    %cst_5 = arith.constant 0.000000e+00 : f32
    %7 = vector.broadcast %cst_5 : f32 to vector<8x128xf32>
    %8 = arith.maximumf %6, %7 : vector<8x128xf32>
    %c0_6 = arith.constant 0 : index
    %c0_7 = arith.constant 0 : index
    %9 = vector.load %arg3[%c0_6, %c0_7] : memref<128x128xf32, #tpu.memory_space<vmem>>, vector<128x128xf32>
    %cst_8 = arith.constant dense<0.000000e+00> : vector<8x128xf32>
    %10 = tpu.matmul %8, %9, %cst_8 {dimension_numbers = #tpu.dot_dimension_numbers<[1], [0], [0], [1], [0, 0, 1, 1], [], []>} : vector<8x128xf32>, vector<128x128xf32>, vector<8x128xf32> -> vector<8x128xf32>
    %11 = vector.extract_strided_slice %0 {offsets = [1, 0], sizes = [1, 128], strides = [1, 1]} : vector<3x128xf32> to vector<1x128xf32>
    %12 = vector.broadcast %11 : vector<1x128xf32> to vector<8x128xf32>
    %13 = arith.addf %10, %12 : vector<8x128xf32>
    %cst_9 = arith.constant 0.000000e+00 : f32
    %14 = vector.broadcast %cst_9 : f32 to vector<8x128xf32>
    %15 = arith.maximumf %13, %14 : vector<8x128xf32>
    %c0_10 = arith.constant 0 : index
    %c0_11 = arith.constant 0 : index
    %16 = vector.load %arg4[%c0_10, %c0_11] : memref<128x128xf32, #tpu.memory_space<vmem>>, vector<128x128xf32>
    %cst_12 = arith.constant dense<0.000000e+00> : vector<8x128xf32>
    %17 = tpu.matmul %15, %16, %cst_12 {dimension_numbers = #tpu.dot_dimension_numbers<[1], [0], [0], [1], [0, 0, 1, 1], [], []>} : vector<8x128xf32>, vector<128x128xf32>, vector<8x128xf32> -> vector<8x128xf32>
    %18 = vector.extract_strided_slice %0 {offsets = [2, 0], sizes = [1, 128], strides = [1, 1]} : vector<3x128xf32> to vector<1x128xf32>
    %19 = vector.broadcast %18 : vector<1x128xf32> to vector<8x128xf32>
    %20 = arith.addf %17, %19 : vector<8x128xf32>
    %c0_13 = arith.constant 0 : index
    %c0_14 = arith.constant 0 : index
    %21 = vector.load %arg6[%c0_13, %c0_14] : memref<8x128xf32, #tpu.memory_space<vmem>>, vector<8x128xf32>
    tpu.vector_store %arg6[%c0_13, %c0_14], %20 {strides = array<i32>} : memref<8x128xf32, #tpu.memory_space<vmem>>, vector<8x128xf32>,
    return
  }
  func.func @transform_0(%arg0: i32) -> (i32, i32) {
    %c0_i32 = arith.constant 0 : i32
    %c0_i32_0 = arith.constant 0 : i32
    return %arg0, %c0_i32 : i32, i32
  }
  func.func @transform_1(%arg0: i32) -> (i32, i32) {
    %c0_i32 = arith.constant 0 : i32
    %c0_i32_0 = arith.constant 0 : i32
    %c0_i32_1 = arith.constant 0 : i32
    return %c0_i32, %c0_i32_0 : i32, i32
  }
  func.func @transform_2(%arg0: i32) -> (i32, i32) {
    %c0_i32 = arith.constant 0 : i32
    %c0_i32_0 = arith.constant 0 : i32
    %c0_i32_1 = arith.constant 0 : i32
    return %c0_i32, %c0_i32_0 : i32, i32
  }
  func.func @transform_3(%arg0: i32) -> (i32, i32) {
    %c0_i32 = arith.constant 0 : i32
    %c0_i32_0 = arith.constant 0 : i32
    %c0_i32_1 = arith.constant 0 : i32
    return %c0_i32, %c0_i32_0 : i32, i32
  }
  func.func @transform_4(%arg0: i32) -> (i32, i32) {
    %c0_i32 = arith.constant 0 : i32
    %c0_i32_0 = arith.constant 0 : i32
    %c0_i32_1 = arith.constant 0 : i32
    return %c0_i32, %c0_i32_0 : i32, i32
  }
  func.func @transform_5(%arg0: i32) -> (i32, i32) {
    %c0_i32 = arith.constant 0 : i32
    %c0_i32_0 = arith.constant 0 : i32
    return %arg0, %c0_i32 : i32, i32
  }
}

</mosaic_0001>

<llo_original>
// kernel: _qnet_forward_impl.1
$region0: #{_qnet_forward_impl.1}
  #allocation0 [shape = 'u32[]', space=smem, size = 0x4, offset = 0x4, fixed_abs, tag = 'smem constant byte address 0x4 - core index']
  #allocation1 [shape = 'u32[144,128]{1,0:T(1,128)}', space=vmem, size = 0x12000, scoped, tag = 'internal scratch']
  %s0 = inlined_call_operand.hbm [shape: f32[8,16], index: 0, kind: input, shape index: {}]
  %s1 = inlined_call_operand.hbm [shape: f32[16,128], index: 1, kind: input, shape index: {}]
  %s2 = inlined_call_operand.hbm [shape: f32[128,128], index: 2, kind: input, shape index: {}]
  %s3 = inlined_call_operand.hbm [shape: f32[128,128], index: 3, kind: input, shape index: {}]
  %s4 = inlined_call_operand.vmem [shape: f32[3,128], index: 4, kind: input, shape index: {}]
  %s5 = inlined_call_operand.vmem [shape: f32[8,128], index: 5, kind: output, shape index: {}]
  %s6 = sld [smem:[#allocation0]]
  $region46: #{_qnet_forward_impl.1} parent=0
    _
  %s8 = ssub.s32 1, %s6
  %s9 = scalar_select 0, %s8, %s6
  $region1: #{_qnet_forward_impl.1} parent=0
    #allocation2 [shape = 'u8[4096]{0}', space=vmem, size = 0x1000, scoped, tag = 'input window, operand 0, single buffered']
    #allocation3 [shape = 's32[1]{0}', space=sflag, size = 0x4, scoped, tag = 'scoped memory for _qnet_forward_impl.1']
    #allocation4 [shape = 'u8[8192]{0}', space=vmem, size = 0x2000, scoped, tag = 'input window, operand 1, single buffered']
    #allocation5 [shape = 's32[1]{0}', space=sflag, size = 0x4, scoped, tag = 'scoped memory for _qnet_forward_impl.1']
    #allocation6 [shape = 'u8[65536]{0}', space=vmem, size = 0x10000, scoped, tag = 'input window, operand 2, single buffered']
    #allocation7 [shape = 'u8[65536]{0}', space=vmem, size = 0x10000, scoped, tag = 'input window, operand 3, single buffered']
    #allocation8 [shape = 's32[1]{0}', space=sflag, size = 0x4, scoped, tag = 'scoped memory for _qnet_forward_impl.1']
    %10 = vsyncpa [#allocation3], 0
    %11 = vsyncpa [#allocation5], 0
    %12 = vsyncpa [#allocation8], 0
    // Predicated region
    $region2: #{_qnet_forward_impl.1} parent=1 // pred_check
      _
    $region3: #{_qnet_forward_impl.1} parent=1 // pred_check_branch
      %14 = sbr.rel (0) target = $region5
    $region4: #{_qnet_forward_impl.1} parent=1 // pred_region
      %s16 = ssub.s32 128, 128
      %17 = vsyncadd [#allocation3], %s16
      %s19 = sshll.u32 [#allocation2], 4
      %s20 = int_to_ptr.vmem [resolvable:$true] %s19
      %22 = dma.hbm_to_vmem [thread:$0]  %s0, 128, %s20, [#allocation3]
    $region5: #{_qnet_forward_impl.1} parent=1 // pred_fallthru
      _
    // Predicated region
    $region6: #{_qnet_forward_impl.1} parent=1 // pred_check
      _
    $region7: #{_qnet_forward_impl.1} parent=1 // pred_check_branch
      %24 = sbr.rel (0) target = $region9
    $region8: #{_qnet_forward_impl.1} parent=1 // pred_region
      %s26 = ssub.s32 256, 256
      %27 = vsyncadd [#allocation5], %s26
      %s28 = sshll.u32 [#allocation4], 4
      %s29 = int_to_ptr.vmem [resolvable:$true] %s28
      %34 = dma.hbm_to_vmem [thread:$0]  %s1, 256, %s29, [#allocation5], 128, 128, 8
    $region9: #{_qnet_forward_impl.1} parent=1 // pred_fallthru
      _
    // Predicated region
    $region10: #{_qnet_forward_impl.1} parent=1 // pred_check
      _
    $region11: #{_qnet_forward_impl.1} parent=1 // pred_check_branch
      %36 = sbr.rel (0) target = $region13
    $region12: #{_qnet_forward_impl.1} parent=1 // pred_region
      %s38 = ssub.s32 2048, 2048
      %39 = vsyncadd [#allocation5], %s38
      %s40 = sshll.u32 [#allocation6], 4
      %s41 = int_to_ptr.vmem [resolvable:$true] %s40
      %46 = dma.hbm_to_vmem [thread:$0]  %s2, 2048, %s41, [#allocation5], 128, 128, 8
    $region13: #{_qnet_forward_impl.1} parent=1 // pred_fallthru
      _
    // Predicated region
    $region14: #{_qnet_forward_impl.1} parent=1 // pred_check
      _
    $region15: #{_qnet_forward_impl.1} parent=1 // pred_check_branch
      %48 = sbr.rel (0) target = $region17
    $region16: #{_qnet_forward_impl.1} parent=1 // pred_region
      %s50 = ssub.s32 2048, 2048
      %51 = vsyncadd [#allocation8], %s50
      %s52 = sshll.u32 [#allocation7], 4
      %s53 = int_to_ptr.vmem [resolvable:$true] %s52
      %58 = dma.hbm_to_vmem [thread:$0]  %s3, 2048, %s53, [#allocation8], 128, 128, 8
    $region17: #{_qnet_forward_impl.1} parent=1 // pred_fallthru
      _
    // Predicated region
    $region18: #{_qnet_forward_impl.1} parent=1 // pred_check
      _
    $region19: #{_qnet_forward_impl.1} parent=1 // pred_check_branch
      %60 = sbr.rel (0) target = $region21
    $region20: #{_qnet_forward_impl.1} parent=1 // pred_region
      _
    $region21: #{_qnet_forward_impl.1} parent=1 // pred_fallthru
      _
    // Predicated region
    $region22: #{_qnet_forward_impl.1} parent=1 // pred_check
      _
    $region23: #{_qnet_forward_impl.1} parent=1 // pred_check_branch
      %62 = sbr.rel (0) target = $region25
    $region24: #{_qnet_forward_impl.1} parent=1 // pred_region
      %63 = dma.done [#allocation3], 128
    $region25: #{_qnet_forward_impl.1} parent=1 // pred_fallthru
      _
    // Predicated region
    $region26: #{_qnet_forward_impl.1} parent=1 // pred_check
      _
    $region27: #{_qnet_forward_impl.1} parent=1 // pred_check_branch
      %65 = sbr.rel (0) target = $region29
    $region28: #{_qnet_forward_impl.1} parent=1 // pred_region
      %66 = dma.done [#allocation5], 256
    $region29: #{_qnet_forward_impl.1} parent=1 // pred_fallthru
      _
    // Predicated region
    $region30: #{_qnet_forward_impl.1} parent=1 // pred_check
      _
    $region31: #{_qnet_forward_impl.1} parent=1 // pred_check_branch
      %68 = sbr.rel (0) target = $region33
    $region32: #{_qnet_forward_impl.1} parent=1 // pred_region
      %69 = dma.done [#allocation5], 2048
    $region33: #{_qnet_forward_impl.1} parent=1 // pred_fallthru
      _
    // Predicated region
    $region34: #{_qnet_forward_impl.1} parent=1 // pred_check
      _
    $region35: #{_qnet_forward_impl.1} parent=1 // pred_check_branch
      %71 = sbr.rel (0) target = $region37
    $region36: #{_qnet_forward_impl.1} parent=1 // pred_region
      %72 = dma.done [#allocation8], 2048
    $region37: #{_qnet_forward_impl.1} parent=1 // pred_fallthru
      _
    %v73 = vld [vmem:[%s4] sm:$0x7]
    %v74 = vld [vmem:[#allocation2] sm:$0xff]
    %v75 = vld [vmem:[#allocation4] sm:$0xff]
    %v76 = vld [vmem:[#allocation4 + $0x8] sm:$0xff]
    %v77 = vlaneseq
    %v78 = vshrl.u32 %v77, 7
    %v79 = vsub.s32 0, %v78
    %v80 = vrot.slane %v73, %v79
    %vm81 = vcmask 130048
    %v83 = vsel %vm81, %v74, 0
    %85 = vmatprep.subr.mxu0 0.0
    %86 = vmatpush1.msra.mxu0 0.0
    %87 = vmatprep.subr.mxu0 0.0
    %88 = vmatpush1.msra.mxu0 0.0
    %89 = vmatprep.subr.mxu0 0.0
    %90 = vmatpush1.msra.mxu0 0.0
    %91 = vmatprep.subr.mxu0 0.0
    %92 = vmatpush1.msra.mxu0 0.0
    %93 = vmatprep.subr.mxu0 0.0
    %94 = vmatpush1.msra.mxu0 0.0
    %95 = vmatprep.subr.mxu0 0.0
    %96 = vmatpush1.msra.mxu0 0.0
    %97 = vmatprep.subr.mxu0 0.0
    %98 = vmatpush1.msra.mxu0 0.0
    %99 = vmatprep.subr.mxu0 0.0
    %100 = vmatpush1.msra.mxu0 0.0
    %101 = vmatprep.subr.mxu0 0.0
    %102 = vmatpush1.msra.mxu0 0.0
    %103 = vmatprep.subr.mxu0 0.0
    %104 = vmatpush1.msra.mxu0 0.0
    %105 = vmatprep.subr.mxu0 0.0
    %106 = vmatpush1.msra.mxu0 0.0
    %107 = vmatprep.subr.mxu0 0.0
    %108 = vmatpush1.msra.mxu0 0.0
    %109 = vmatprep.subr.mxu0 0.0
    %110 = vmatpush1.msra.mxu0 0.0
    %111 = vmatprep.subr.mxu0 0.0
    %112 = vmatpush1.msra.mxu0 0.0
    %113 = vmatprep.subr.mxu0 0.0
    %114 = vmatpush1.msra.mxu0 %v76
    %115 = vmatprep.subr.mxu0 0.0
    %116 = vmatpush1.msra.mxu0 %v75
    %117 = vmatprep.subr.mxu0 0.0
    %118 = vmatpush2.msra.mxu0 0.0
    %119 = vmatprep.subr.mxu0 0.0
    %120 = vmatpush2.msra.mxu0 0.0
    %121 = vmatprep.subr.mxu0 0.0
    %122 = vmatpush2.msra.mxu0 0.0
    %123 = vmatprep.subr.mxu0 0.0
    %124 = vmatpush2.msra.mxu0 0.0
    %125 = vmatprep.subr.mxu0 0.0
    %126 = vmatpush2.msra.mxu0 0.0
    %127 = vmatprep.subr.mxu0 0.0
    %128 = vmatpush2.msra.mxu0 0.0
    %129 = vmatprep.subr.mxu0 0.0
    %130 = vmatpush2.msra.mxu0 0.0
    %131 = vmatprep.subr.mxu0 0.0
    %132 = vmatpush2.msra.mxu0 0.0
    %133 = vmatprep.subr.mxu0 0.0
    %134 = vmatpush2.msra.mxu0 0.0
    %135 = vmatprep.subr.mxu0 0.0
    %136 = vmatpush2.msra.mxu0 0.0
    %137 = vmatprep.subr.mxu0 0.0
    %138 = vmatpush2.msra.mxu0 0.0
    %139 = vmatprep.subr.mxu0 0.0
    %140 = vmatpush2.msra.mxu0 0.0
    %141 = vmatprep.subr.mxu0 0.0
    %142 = vmatpush2.msra.mxu0 0.0
    %143 = vmatprep.subr.mxu0 0.0
    %144 = vmatpush2.msra.mxu0 0.0
    %145 = vmatprep.subr.mxu0 0.0
    %146 = vmatpush2.msra.mxu0 0.0
    %147 = vmatprep.subr.mxu0 0.0
    %148 = vmatpush2.msra.mxu0 0.0
    %149 = vmatprep.mubr.f32.mxu0 0.0
    %150 = vmatmul.mubr.f32.gmra.mxu0 %v83
    %v151 = vpop.f32.mrf.mxu0
    %v152 = vadd.f32 %v80, %v151
    %v153 = vpop.f32.mrf.mxu0
    %154 = vdwg.mxu0
    %v155 = vmax.f32 %v152, 0.0
    %v156 = vld [vmem:[#allocation6] sm:$0xff]
    %v157 = vld [vmem:[#allocation6 + $0x8] sm:$0xff]
    %v158 = vld [vmem:[#allocation6 + $0x10] sm:$0xff]
    %v159 = vld [vmem:[#allocation6 + $0x18] sm:$0xff]
    %v160 = vld [vmem:[#allocation6 + $0x20] sm:$0xff]
    %v161 = vld [vmem:[#allocation6 + $0x28] sm:$0xff]
    %v162 = vld [vmem:[#allocation6 + $0x30] sm:$0xff]
    %v163 = vld [vmem:[#allocation6 + $0x38] sm:$0xff]
    %v164 = vld [vmem:[#allocation6 + $0x40] sm:$0xff]
    %v165 = vld [vmem:[#allocation6 + $0x48] sm:$0xff]
    %v166 = vld [vmem:[#allocation6 + $0x50] sm:$0xff]
    %v167 = vld [vmem:[#allocation6 + $0x58] sm:$0xff]
    %v168 = vld [vmem:[#allocation6 + $0x60] sm:$0xff]
    %v169 = vld [vmem:[#allocation6 + $0x68] sm:$0xff]
    %v170 = vld [vmem:[#allocation6 + $0x70] sm:$0xff]
    %v171 = vld [vmem:[#allocation6 + $0x78] sm:$0xff]
    %v172 = vlaneseq
    %v173 = vshrl.u32 %v172, 7
    %v174 = vsub.s32 1, %v173
    %v175 = vrot.slane %v73, %v174
    %176 = vmatprep.subr.mxu0 0.0
    %177 = vmatpush1.msra.mxu0 %v171
    %178 = vmatprep.subr.mxu0 0.0
    %179 = vmatpush1.msra.mxu0 %v170
    %180 = vmatprep.subr.mxu0 0.0
    %181 = vmatpush1.msra.mxu0 %v169
    %182 = vmatprep.subr.mxu0 0.0
    %183 = vmatpush1.msra.mxu0 %v168
    %184 = vmatprep.subr.mxu0 0.0
    %185 = vmatpush1.msra.mxu0 %v167
    %186 = vmatprep.subr.mxu0 0.0
    %187 = vmatpush1.msra.mxu0 %v166
    %188 = vmatprep.subr.mxu0 0.0
    %189 = vmatpush1.msra.mxu0 %v165
    %190 = vmatprep.subr.mxu0 0.0
    %191 = vmatpush1.msra.mxu0 %v164
    %192 = vmatprep.subr.mxu0 0.0
    %193 = vmatpush1.msra.mxu0 %v163
    %194 = vmatprep.subr.mxu0 0.0
    %195 = vmatpush1.msra.mxu0 %v162
    %196 = vmatprep.subr.mxu0 0.0
    %197 = vmatpush1.msra.mxu0 %v161
    %198 = vmatprep.subr.mxu0 0.0
    %199 = vmatpush1.msra.mxu0 %v160
    %200 = vmatprep.subr.mxu0 0.0
    %201 = vmatpush1.msra.mxu0 %v159
    %202 = vmatprep.subr.mxu0 0.0
    %203 = vmatpush1.msra.mxu0 %v158
    %204 = vmatprep.subr.mxu0 0.0
    %205 = vmatpush1.msra.mxu0 %v157
    %206 = vmatprep.subr.mxu0 0.0
    %207 = vmatpush1.msra.mxu0 %v156
    %208 = vmatprep.subr.mxu0 0.0
    %209 = vmatpush2.msra.mxu0 0.0
    %210 = vmatprep.subr.mxu0 0.0
    %211 = vmatpush2.msra.mxu0 0.0
    %212 = vmatprep.subr.mxu0 0.0
    %213 = vmatpush2.msra.mxu0 0.0
    %214 = vmatprep.subr.mxu0 0.0
    %215 = vmatpush2.msra.mxu0 0.0
    %216 = vmatprep.subr.mxu0 0.0
    %217 = vmatpush2.msra.mxu0 0.0
    %218 = vmatprep.subr.mxu0 0.0
    %219 = vmatpush2.msra.mxu0 0.0
    %220 = vmatprep.subr.mxu0 0.0
    %221 = vmatpush2.msra.mxu0 0.0
    %222 = vmatprep.subr.mxu0 0.0
    %223 = vmatpush2.msra.mxu0 0.0
    %224 = vmatprep.subr.mxu0 0.0
    %225 = vmatpush2.msra.mxu0 0.0
    %226 = vmatprep.subr.mxu0 0.0
    %227 = vmatpush2.msra.mxu0 0.0
    %228 = vmatprep.subr.mxu0 0.0
    %229 = vmatpush2.msra.mxu0 0.0
    %230 = vmatprep.subr.mxu0 0.0
    %231 = vmatpush2.msra.mxu0 0.0
    %232 = vmatprep.subr.mxu0 0.0
    %233 = vmatpush2.msra.mxu0 0.0
    %234 = vmatprep.subr.mxu0 0.0
    %235 = vmatpush2.msra.mxu0 0.0
    %236 = vmatprep.subr.mxu0 0.0
    %237 = vmatpush2.msra.mxu0 0.0
    %238 = vmatprep.subr.mxu0 0.0
    %239 = vmatpush2.msra.mxu0 0.0
    %240 = vmatprep.mubr.f32.mxu0 0.0
    %241 = vmatmul.mubr.f32.gmra.mxu0 %v155
    %v242 = vpop.f32.mrf.mxu0
    %v243 = vadd.f32 %v175, %v242
    %v244 = vpop.f32.mrf.mxu0
    %245 = vdwg.mxu0
    %v246 = vmax.f32 %v243, 0.0
    %v247 = vld [vmem:[#allocation7] sm:$0xff]
    %v248 = vld [vmem:[#allocation7 + $0x8] sm:$0xff]
    %v249 = vld [vmem:[#allocation7 + $0x10] sm:$0xff]
    %v250 = vld [vmem:[#allocation7 + $0x18] sm:$0xff]
    %v251 = vld [vmem:[#allocation7 + $0x20] sm:$0xff]
    %v252 = vld [vmem:[#allocation7 + $0x28] sm:$0xff]
    %v253 = vld [vmem:[#allocation7 + $0x30] sm:$0xff]
    %v254 = vld [vmem:[#allocation7 + $0x38] sm:$0xff]
    %v255 = vld [vmem:[#allocation7 + $0x40] sm:$0xff]
    %v256 = vld [vmem:[#allocation7 + $0x48] sm:$0xff]
    %v257 = vld [vmem:[#allocation7 + $0x50] sm:$0xff]
    %v258 = vld [vmem:[#allocation7 + $0x58] sm:$0xff]
    %v259 = vld [vmem:[#allocation7 + $0x60] sm:$0xff]
    %v260 = vld [vmem:[#allocation7 + $0x68] sm:$0xff]
    %v261 = vld [vmem:[#allocation7 + $0x70] sm:$0xff]
    %v262 = vld [vmem:[#allocation7 + $0x78] sm:$0xff]
    %v263 = vlaneseq
    %v264 = vshrl.u32 %v263, 7
    %v265 = vsub.s32 2, %v264
    %v266 = vrot.slane %v73, %v265
    %267 = vmatprep.subr.mxu0 0.0
    %268 = vmatpush1.msra.mxu0 %v262
    %269 = vmatprep.subr.mxu0 0.0
    %270 = vmatpush1.msra.mxu0 %v261
    %271 = vmatprep.subr.mxu0 0.0
    %272 = vmatpush1.msra.mxu0 %v260
    %273 = vmatprep.subr.mxu0 0.0
    %274 = vmatpush1.msra.mxu0 %v259
    %275 = vmatprep.subr.mxu0 0.0
    %276 = vmatpush1.msra.mxu0 %v258
    %277 = vmatprep.subr.mxu0 0.0
    %278 = vmatpush1.msra.mxu0 %v257
    %279 = vmatprep.subr.mxu0 0.0
    %280 = vmatpush1.msra.mxu0 %v256
    %281 = vmatprep.subr.mxu0 0.0
    %282 = vmatpush1.msra.mxu0 %v255
    %283 = vmatprep.subr.mxu0 0.0
    %284 = vmatpush1.msra.mxu0 %v254
    %285 = vmatprep.subr.mxu0 0.0
    %286 = vmatpush1.msra.mxu0 %v253
    %287 = vmatprep.subr.mxu0 0.0
    %288 = vmatpush1.msra.mxu0 %v252
    %289 = vmatprep.subr.mxu0 0.0
    %290 = vmatpush1.msra.mxu0 %v251
    %291 = vmatprep.subr.mxu0 0.0
    %292 = vmatpush1.msra.mxu0 %v250
    %293 = vmatprep.subr.mxu0 0.0
    %294 = vmatpush1.msra.mxu0 %v249
    %295 = vmatprep.subr.mxu0 0.0
    %296 = vmatpush1.msra.mxu0 %v248
    %297 = vmatprep.subr.mxu0 0.0
    %298 = vmatpush1.msra.mxu0 %v247
    %299 = vmatprep.subr.mxu0 0.0
    %300 = vmatpush2.msra.mxu0 0.0
    %301 = vmatprep.subr.mxu0 0.0
    %302 = vmatpush2.msra.mxu0 0.0
    %303 = vmatprep.subr.mxu0 0.0
    %304 = vmatpush2.msra.mxu0 0.0
    %305 = vmatprep.subr.mxu0 0.0
    %306 = vmatpush2.msra.mxu0 0.0
    %307 = vmatprep.subr.mxu0 0.0
    %308 = vmatpush2.msra.mxu0 0.0
    %309 = vmatprep.subr.mxu0 0.0
    %310 = vmatpush2.msra.mxu0 0.0
    %311 = vmatprep.subr.mxu0 0.0
    %312 = vmatpush2.msra.mxu0 0.0
    %313 = vmatprep.subr.mxu0 0.0
    %314 = vmatpush2.msra.mxu0 0.0
    %315 = vmatprep.subr.mxu0 0.0
    %316 = vmatpush2.msra.mxu0 0.0
    %317 = vmatprep.subr.mxu0 0.0
    %318 = vmatpush2.msra.mxu0 0.0
    %319 = vmatprep.subr.mxu0 0.0
    %320 = vmatpush2.msra.mxu0 0.0
    %321 = vmatprep.subr.mxu0 0.0
    %322 = vmatpush2.msra.mxu0 0.0
    %323 = vmatprep.subr.mxu0 0.0
    %324 = vmatpush2.msra.mxu0 0.0
    %325 = vmatprep.subr.mxu0 0.0
    %326 = vmatpush2.msra.mxu0 0.0
    %327 = vmatprep.subr.mxu0 0.0
    %328 = vmatpush2.msra.mxu0 0.0
    %329 = vmatprep.subr.mxu0 0.0
    %330 = vmatpush2.msra.mxu0 0.0
    %331 = vmatprep.mubr.f32.mxu0 0.0
    %332 = vmatmul.mubr.f32.gmra.mxu0 %v246
    %v333 = vpop.f32.mrf.mxu0
    %v334 = vadd.f32 %v266, %v333
    %v335 = vpop.f32.mrf.mxu0
    %336 = vdwg.mxu0
    %337 = vst [vmem:[%s5] sm:$0xff] %v334
    // Predicated region
    $region38: #{_qnet_forward_impl.1} parent=1 // pred_check
      _
    $region39: #{_qnet_forward_impl.1} parent=1 // pred_check_branch
      %339 = sbr.rel (0) target = $region41
    $region40: #{_qnet_forward_impl.1} parent=1 // pred_region
      _
    $region41: #{_qnet_forward_impl.1} parent=1 // pred_fallthru
      _
    // Predicated region
    $region42: #{_qnet_forward_impl.1} parent=1 // pred_check
      _
    $region43: #{_qnet_forward_impl.1} parent=1 // pred_check_branch
      %341 = sbr.rel (0) target = $region45
    $region44: #{_qnet_forward_impl.1} parent=1 // pred_region
      _
    $region45: #{_qnet_forward_impl.1} parent=1 // pred_fallthru
      _
    %342 = vsyncpa [#allocation3], 1
    %343 = vsyncpa [#allocation5], 1
    %344 = vsyncpa [#allocation8], 1

</llo_original>
